<compile_context>
chip_gen: v7x
topology: tpu7x:2x2x1
jax: 0.10.0
libtpu: 0.0.40
codegen_flags: <defaults>
</compile_context>

<pallas_src>
import functools

import jax
import jax.numpy as jnp
from jax.experimental import pallas as pl
from jax.experimental.pallas import tpu as pltpu

INPUT_FEATURES = 10
NEURONS = 100
OUT_FEATURES = 1

PAD_F = 128   # padded input feature width (lane-dense)
PAD_H = 128   # padded hidden width
PAD_O = 128   # padded output width (lane-dense stores; wrapper slices [:, :1])

N_HIDDEN = 5  # hl1..hl5


def _round_up(x, m):
    return (x + m - 1) // m * m


def _mlp_kernel(x_ref,
                w_in_ref, b_in_ref,
                w_hid_ref, b_hid_ref,
                w_out_ref, b_out_ref,
                o_ref):
    # x block: (TB, PAD_F) f32, already lane-dense.
    h = x_ref[...]

    # input_layer + relu
    h = jnp.dot(h, w_in_ref[...], preferred_element_type=jnp.float32)
    h = jnp.maximum(h + b_in_ref[...], 0.0)

    # hl1..hl5 (+ relu); dropout layers are identity (rate=0.0 / eval mode).
    for l in range(N_HIDDEN):            # static unroll -> LLO can interleave
        h = jnp.dot(h, w_hid_ref[l], preferred_element_type=jnp.float32)
        h = jnp.maximum(h + b_hid_ref[l], 0.0)

    # output_layer (no activation); padded to 128 lanes -> unmasked stores.
    out = jnp.dot(h, w_out_ref[...], preferred_element_type=jnp.float32)
    out = out + b_out_ref[...]
    o_ref[...] = out.astype(o_ref.dtype)


def _pad2(a, rows, cols):
    r, c = a.shape
    return jnp.pad(a, ((0, rows - r), (0, cols - c)))


@jax.jit
def cann_forward(x, params):
    """x: (B, 10) float32 -> (B, 1) float32."""
    B = x.shape[0]

    # Batch tile: multiple of 8 sublanes, capped at 512 rows.
    TB = min(512, _round_up(max(B, 1), 8))
    B_pad = _round_up(B, TB)
    grid = (pl.cdiv(B_pad, TB),)

    # --- lane-dense / row-padded operands (zero padding keeps math exact) ---
    x_p = jnp.pad(x.astype(jnp.float32),
                  ((0, B_pad - B), (0, PAD_F - INPUT_FEATURES)))

    (w0, b0), *hidden, (w6, b6) = params
    w_in = _pad2(w0, PAD_F, PAD_H)                       # (128, 128)
    b_in = _pad2(b0, 1, PAD_H)                           # (1, 128)
    w_hid = jnp.stack([_pad2(w, PAD_H, PAD_H) for (w, _) in hidden])   # (5,128,128)
    b_hid = jnp.stack([_pad2(b, 1, PAD_H) for (_, b) in hidden])       # (5,1,128)
    w_out = _pad2(w6, PAD_H, PAD_O)                      # (128, 128)
    b_out = _pad2(b6, 1, PAD_O)                          # (1, 128)

    # --- BlockSpecs: x/out tiled over batch; weights resident (constant idx) ---
    in_specs = [
        pl.BlockSpec((TB, PAD_F), lambda i: (i, 0)),             # x
        pl.BlockSpec((PAD_F, PAD_H), lambda i: (0, 0)),          # w_in
        pl.BlockSpec((1, PAD_H), lambda i: (0, 0)),              # b_in
        pl.BlockSpec((N_HIDDEN, PAD_H, PAD_H), lambda i: (0, 0, 0)),  # w_hid
        pl.BlockSpec((N_HIDDEN, 1, PAD_H), lambda i: (0, 0, 0)),      # b_hid
        pl.BlockSpec((PAD_H, PAD_O), lambda i: (0, 0)),          # w_out
        pl.BlockSpec((1, PAD_O), lambda i: (0, 0)),              # b_out
    ]
    out_specs = pl.BlockSpec((TB, PAD_O), lambda i: (i, 0))

    flops = 2 * B_pad * PAD_H * PAD_H * 7
    bytes_accessed = (B_pad * PAD_F * 4 + B_pad * PAD_O * 4
                      + (PAD_F * PAD_H + 5 * PAD_H * PAD_H + PAD_H * PAD_O) * 4
                      + 7 * PAD_H * 4)

    out_pad = pl.pallas_call(
        _mlp_kernel,
        out_shape=jax.ShapeDtypeStruct((B_pad, PAD_O), jnp.float32),
        grid=grid,
        in_specs=in_specs,
        out_specs=out_specs,
        compiler_params=pltpu.CompilerParams(
            dimension_semantics=("parallel",)),
        cost_estimate=pl.CostEstimate(flops=flops, transcendentals=0,
                                      bytes_accessed=bytes_accessed),
    )(x_p, w_in, b_in, w_hid, b_hid, w_out, b_out)

    return out_pad[:B, :OUT_FEATURES]


def init_params(key):
    """Deterministic init matching nn.Linear default (U[-1/sqrt(fan_in), +])."""
    dims = ([(INPUT_FEATURES, NEURONS)]
            + [(NEURONS, NEURONS)] * N_HIDDEN
            + [(NEURONS, OUT_FEATURES)])
    params = []
    for (fan_in, fan_out) in dims:
        key, kw, kb = jax.random.split(key, 3)
        bound = 1.0 / jnp.sqrt(jnp.float32(fan_in))
        # Stored transposed: (in, out) so the kernel does x @ W.
        w = jax.random.uniform(kw, (fan_in, fan_out), jnp.float32, -bound, bound)
        b = jax.random.uniform(kb, (1, fan_out), jnp.float32, -bound, bound)
        params.append((w, b))
    return params


def cann_reference(x, params):
    h = x
    for i, (w, b) in enumerate(params):
        h = h @ w + b
        if i < len(params) - 1:
            h = jnp.maximum(h, 0.0)
    return h


if __name__ == "__main__":
    key = jax.random.PRNGKey(0)
    kx, kp = jax.random.split(key)

    B = 8
    x = jax.random.normal(kx, (B, INPUT_FEATURES), jnp.float32)
    params = init_params(kp)

    out = cann_forward(x, params)
    out = jax.block_until_ready(out)

    ref = cann_reference(x, params)
    assert out.shape == (B, OUT_FEATURES), out.shape
    assert jnp.allclose(out, ref, atol=1e-4, rtol=1e-4), (
        f"max err {jnp.max(jnp.abs(out - ref))}")

    # Also exercise a larger, non-multiple-of-tile batch to check the grid path.
    B2 = 1000
    x2 = jax.random.normal(kx, (B2, INPUT_FEATURES), jnp.float32)
    out2 = jax.block_until_ready(cann_forward(x2, params))
    ref2 = cann_reference(x2, params)
    assert out2.shape == (B2, OUT_FEATURES), out2.shape
    assert jnp.allclose(out2, ref2, atol=1e-4, rtol=1e-4), (
        f"max err {jnp.max(jnp.abs(out2 - ref2))}")

    print("KERNEL_OK")
</pallas_src>

<mosaic_0001>
module attributes {stable_mosaic.version = 11 : i64} {
  func.func @_mlp_kernel(%arg0: i32, %arg1: memref<8x128xf32, #tpu.memory_space<vmem>>, %arg2: memref<128x128xf32, #tpu.memory_space<vmem>>, %arg3: memref<1x128xf32, #tpu.memory_space<vmem>>, %arg4: memref<5x128x128xf32, #tpu.memory_space<vmem>>, %arg5: memref<5x1x128xf32, #tpu.memory_space<vmem>>, %arg6: memref<128x128xf32, #tpu.memory_space<vmem>>, %arg7: memref<1x128xf32, #tpu.memory_space<vmem>>, %arg8: memref<8x128xf32, #tpu.memory_space<vmem>>) attributes {dimension_semantics = [#tpu.dimension_semantics<parallel>], iteration_bounds = array<i64: 1>, scalar_prefetch = 0 : i64, scratch_operands = 0 : i64, tpu.core_type = #tpu.core_type<tc>, window_params = [{transform_indices = @transform_0, window_bounds = array<i64: 8, 128>}, {pipeline_mode = #tpu.pipeline_mode<synchronous>, transform_indices = @transform_1, window_bounds = array<i64: 128, 128>}, {pipeline_mode = #tpu.pipeline_mode<synchronous>, transform_indices = @transform_2, window_bounds = array<i64: 1, 128>}, {pipeline_mode = #tpu.pipeline_mode<synchronous>, transform_indices = @transform_3, window_bounds = array<i64: 5, 128, 128>}, {pipeline_mode = #tpu.pipeline_mode<synchronous>, transform_indices = @transform_4, window_bounds = array<i64: 5, 1, 128>}, {pipeline_mode = #tpu.pipeline_mode<synchronous>, transform_indices = @transform_5, window_bounds = array<i64: 128, 128>}, {pipeline_mode = #tpu.pipeline_mode<synchronous>, transform_indices = @transform_6, window_bounds = array<i64: 1, 128>}, {transform_indices = @transform_7, window_bounds = array<i64: 8, 128>}]} {
    %c0 = arith.constant 0 : index
    %c0_0 = arith.constant 0 : index
    %0 = vector.load %arg1[%c0, %c0_0] : memref<8x128xf32, #tpu.memory_space<vmem>>, vector<8x128xf32>
    %c0_1 = arith.constant 0 : index
    %c0_2 = arith.constant 0 : index
    %1 = vector.load %arg2[%c0_1, %c0_2] : memref<128x128xf32, #tpu.memory_space<vmem>>, vector<128x128xf32>
    %cst = arith.constant dense<0.000000e+00> : vector<8x128xf32>
    %2 = tpu.matmul %0, %1, %cst {dimension_numbers = #tpu.dot_dimension_numbers<[1], [0], [0], [1], [0, 0, 1, 1], [], []>} : vector<8x128xf32>, vector<128x128xf32>, vector<8x128xf32> -> vector<8x128xf32>
    %c0_3 = arith.constant 0 : index
    %c0_4 = arith.constant 0 : index
    %3 = vector.load %arg3[%c0_3, %c0_4] : memref<1x128xf32, #tpu.memory_space<vmem>>, vector<1x128xf32>
    %4 = vector.broadcast %3 : vector<1x128xf32> to vector<8x128xf32>
    %5 = arith.addf %2, %4 : vector<8x128xf32>
    %cst_5 = arith.constant 0.000000e+00 : f32
    %6 = vector.broadcast %cst_5 : f32 to vector<8x128xf32>
    %7 = arith.maximumf %5, %6 : vector<8x128xf32>
    %c0_6 = arith.constant 0 : index
    %c0_7 = arith.constant 0 : index
    %c0_8 = arith.constant 0 : index
    %8 = vector.load %arg4[%c0_6, %c0_7, %c0_8] : memref<5x128x128xf32, #tpu.memory_space<vmem>>, vector<1x128x128xf32>
    %9 = vector.shape_cast %8 : vector<1x128x128xf32> to vector<128x128xf32>
    %cst_9 = arith.constant dense<0.000000e+00> : vector<8x128xf32>
    %10 = tpu.matmul %7, %9, %cst_9 {dimension_numbers = #tpu.dot_dimension_numbers<[1], [0], [0], [1], [0, 0, 1, 1], [], []>} : vector<8x128xf32>, vector<128x128xf32>, vector<8x128xf32> -> vector<8x128xf32>
    %c0_10 = arith.constant 0 : index
    %c0_11 = arith.constant 0 : index
    %c0_12 = arith.constant 0 : index
    %11 = vector.load %arg5[%c0_10, %c0_11, %c0_12] : memref<5x1x128xf32, #tpu.memory_space<vmem>>, vector<1x1x128xf32>
    %12 = vector.shape_cast %11 : vector<1x1x128xf32> to vector<1x128xf32>
    %13 = vector.broadcast %12 : vector<1x128xf32> to vector<8x128xf32>
    %14 = arith.addf %10, %13 : vector<8x128xf32>
    %cst_13 = arith.constant 0.000000e+00 : f32
    %15 = vector.broadcast %cst_13 : f32 to vector<8x128xf32>
    %16 = arith.maximumf %14, %15 : vector<8x128xf32>
    %c1 = arith.constant 1 : index
    %c0_14 = arith.constant 0 : index
    %c0_15 = arith.constant 0 : index
    %17 = vector.load %arg4[%c1, %c0_14, %c0_15] : memref<5x128x128xf32, #tpu.memory_space<vmem>>, vector<1x128x128xf32>
    %18 = vector.shape_cast %17 : vector<1x128x128xf32> to vector<128x128xf32>
    %cst_16 = arith.constant dense<0.000000e+00> : vector<8x128xf32>
    %19 = tpu.matmul %16, %18, %cst_16 {dimension_numbers = #tpu.dot_dimension_numbers<[1], [0], [0], [1], [0, 0, 1, 1], [], []>} : vector<8x128xf32>, vector<128x128xf32>, vector<8x128xf32> -> vector<8x128xf32>
    %c1_17 = arith.constant 1 : index
    %c0_18 = arith.constant 0 : index
    %c0_19 = arith.constant 0 : index
    %20 = vector.load %arg5[%c1_17, %c0_18, %c0_19] : memref<5x1x128xf32, #tpu.memory_space<vmem>>, vector<1x1x128xf32>
    %21 = vector.shape_cast %20 : vector<1x1x128xf32> to vector<1x128xf32>
    %22 = vector.broadcast %21 : vector<1x128xf32> to vector<8x128xf32>
    %23 = arith.addf %19, %22 : vector<8x128xf32>
    %cst_20 = arith.constant 0.000000e+00 : f32
    %24 = vector.broadcast %cst_20 : f32 to vector<8x128xf32>
    %25 = arith.maximumf %23, %24 : vector<8x128xf32>
    %c2 = arith.constant 2 : index
    %c0_21 = arith.constant 0 : index
    %c0_22 = arith.constant 0 : index
    %26 = vector.load %arg4[%c2, %c0_21, %c0_22] : memref<5x128x128xf32, #tpu.memory_space<vmem>>, vector<1x128x128xf32>
    %27 = vector.shape_cast %26 : vector<1x128x128xf32> to vector<128x128xf32>
    %cst_23 = arith.constant dense<0.000000e+00> : vector<8x128xf32>
    %28 = tpu.matmul %25, %27, %cst_23 {dimension_numbers = #tpu.dot_dimension_numbers<[1], [0], [0], [1], [0, 0, 1, 1], [], []>} : vector<8x128xf32>, vector<128x128xf32>, vector<8x128xf32> -> vector<8x128xf32>
    %c2_24 = arith.constant 2 : index
    %c0_25 = arith.constant 0 : index
    %c0_26 = arith.constant 0 : index
    %29 = vector.load %arg5[%c2_24, %c0_25, %c0_26] : memref<5x1x128xf32, #tpu.memory_space<vmem>>, vector<1x1x128xf32>
    %30 = vector.shape_cast %29 : vector<1x1x128xf32> to vector<1x128xf32>
    %31 = vector.broadcast %30 : vector<1x128xf32> to vector<8x128xf32>
    %32 = arith.addf %28, %31 : vector<8x128xf32>
    %cst_27 = arith.constant 0.000000e+00 : f32
    %33 = vector.broadcast %cst_27 : f32 to vector<8x128xf32>
    %34 = arith.maximumf %32, %33 : vector<8x128xf32>
    %c3 = arith.constant 3 : index
    %c0_28 = arith.constant 0 : index
    %c0_29 = arith.constant 0 : index
    %35 = vector.load %arg4[%c3, %c0_28, %c0_29] : memref<5x128x128xf32, #tpu.memory_space<vmem>>, vector<1x128x128xf32>
    %36 = vector.shape_cast %35 : vector<1x128x128xf32> to vector<128x128xf32>
    %cst_30 = arith.constant dense<0.000000e+00> : vector<8x128xf32>
    %37 = tpu.matmul %34, %36, %cst_30 {dimension_numbers = #tpu.dot_dimension_numbers<[1], [0], [0], [1], [0, 0, 1, 1], [], []>} : vector<8x128xf32>, vector<128x128xf32>, vector<8x128xf32> -> vector<8x128xf32>
    %c3_31 = arith.constant 3 : index
    %c0_32 = arith.constant 0 : index
    %c0_33 = arith.constant 0 : index
    %38 = vector.load %arg5[%c3_31, %c0_32, %c0_33] : memref<5x1x128xf32, #tpu.memory_space<vmem>>, vector<1x1x128xf32>
    %39 = vector.shape_cast %38 : vector<1x1x128xf32> to vector<1x128xf32>
    %40 = vector.broadcast %39 : vector<1x128xf32> to vector<8x128xf32>
    %41 = arith.addf %37, %40 : vector<8x128xf32>
    %cst_34 = arith.constant 0.000000e+00 : f32
    %42 = vector.broadcast %cst_34 : f32 to vector<8x128xf32>
    %43 = arith.maximumf %41, %42 : vector<8x128xf32>
    %c4 = arith.constant 4 : index
    %c0_35 = arith.constant 0 : index
    %c0_36 = arith.constant 0 : index
    %44 = vector.load %arg4[%c4, %c0_35, %c0_36] : memref<5x128x128xf32, #tpu.memory_space<vmem>>, vector<1x128x128xf32>
    %45 = vector.shape_cast %44 : vector<1x128x128xf32> to vector<128x128xf32>
    %cst_37 = arith.constant dense<0.000000e+00> : vector<8x128xf32>
    %46 = tpu.matmul %43, %45, %cst_37 {dimension_numbers = #tpu.dot_dimension_numbers<[1], [0], [0], [1], [0, 0, 1, 1], [], []>} : vector<8x128xf32>, vector<128x128xf32>, vector<8x128xf32> -> vector<8x128xf32>
    %c4_38 = arith.constant 4 : index
    %c0_39 = arith.constant 0 : index
    %c0_40 = arith.constant 0 : index
    %47 = vector.load %arg5[%c4_38, %c0_39, %c0_40] : memref<5x1x128xf32, #tpu.memory_space<vmem>>, vector<1x1x128xf32>
    %48 = vector.shape_cast %47 : vector<1x1x128xf32> to vector<1x128xf32>
    %49 = vector.broadcast %48 : vector<1x128xf32> to vector<8x128xf32>
    %50 = arith.addf %46, %49 : vector<8x128xf32>
    %cst_41 = arith.constant 0.000000e+00 : f32
    %51 = vector.broadcast %cst_41 : f32 to vector<8x128xf32>
    %52 = arith.maximumf %50, %51 : vector<8x128xf32>
    %c0_42 = arith.constant 0 : index
    %c0_43 = arith.constant 0 : index
    %53 = vector.load %arg6[%c0_42, %c0_43] : memref<128x128xf32, #tpu.memory_space<vmem>>, vector<128x128xf32>
    %cst_44 = arith.constant dense<0.000000e+00> : vector<8x128xf32>
    %54 = tpu.matmul %52, %53, %cst_44 {dimension_numbers = #tpu.dot_dimension_numbers<[1], [0], [0], [1], [0, 0, 1, 1], [], []>} : vector<8x128xf32>, vector<128x128xf32>, vector<8x128xf32> -> vector<8x128xf32>
    %c0_45 = arith.constant 0 : index
    %c0_46 = arith.constant 0 : index
    %55 = vector.load %arg7[%c0_45, %c0_46] : memref<1x128xf32, #tpu.memory_space<vmem>>, vector<1x128xf32>
    %56 = vector.broadcast %55 : vector<1x128xf32> to vector<8x128xf32>
    %57 = arith.addf %54, %56 : vector<8x128xf32>
    %c0_47 = arith.constant 0 : index
    %c0_48 = arith.constant 0 : index
    %58 = vector.load %arg8[%c0_47, %c0_48] : memref<8x128xf32, #tpu.memory_space<vmem>>, vector<8x128xf32>
    tpu.vector_store %arg8[%c0_47, %c0_48], %57 {strides = array<i32>} : memref<8x128xf32, #tpu.memory_space<vmem>>, vector<8x128xf32>,
    return
  }
  func.func @transform_0(%arg0: i32) -> (i32, i32) {
    %c0_i32 = arith.constant 0 : i32
    %c0_i32_0 = arith.constant 0 : i32
    return %arg0, %c0_i32 : i32, i32
  }
  func.func @transform_1(%arg0: i32) -> (i32, i32) {
    %c0_i32 = arith.constant 0 : i32
    %c0_i32_0 = arith.constant 0 : i32
    %c0_i32_1 = arith.constant 0 : i32
    return %c0_i32, %c0_i32_0 : i32, i32
  }
  func.func @transform_2(%arg0: i32) -> (i32, i32) {
    %c0_i32 = arith.constant 0 : i32
    %c0_i32_0 = arith.constant 0 : i32
    %c0_i32_1 = arith.constant 0 : i32
    return %c0_i32, %c0_i32_0 : i32, i32
  }
  func.func @transform_3(%arg0: i32) -> (i32, i32, i32) {
    %c0_i32 = arith.constant 0 : i32
    %c0_i32_0 = arith.constant 0 : i32
    %c0_i32_1 = arith.constant 0 : i32
    %c0_i32_2 = arith.constant 0 : i32
    return %c0_i32, %c0_i32_0, %c0_i32_1 : i32, i32, i32
  }
  func.func @transform_4(%arg0: i32) -> (i32, i32, i32) {
    %c0_i32 = arith.constant 0 : i32
    %c0_i32_0 = arith.constant 0 : i32
    %c0_i32_1 = arith.constant 0 : i32
    %c0_i32_2 = arith.constant 0 : i32
    return %c0_i32, %c0_i32_0, %c0_i32_1 : i32, i32, i32
  }
  func.func @transform_5(%arg0: i32) -> (i32, i32) {
    %c0_i32 = arith.constant 0 : i32
    %c0_i32_0 = arith.constant 0 : i32
    %c0_i32_1 = arith.constant 0 : i32
    return %c0_i32, %c0_i32_0 : i32, i32
  }
  func.func @transform_6(%arg0: i32) -> (i32, i32) {
    %c0_i32 = arith.constant 0 : i32
    %c0_i32_0 = arith.constant 0 : i32
    %c0_i32_1 = arith.constant 0 : i32
    return %c0_i32, %c0_i32_0 : i32, i32
  }
  func.func @transform_7(%arg0: i32) -> (i32, i32) {
    %c0_i32 = arith.constant 0 : i32
    %c0_i32_0 = arith.constant 0 : i32
    return %arg0, %c0_i32 : i32, i32
  }
}

</mosaic_0001>

<llo_original>
// kernel: cann_forward.1
$region0: #{cann_forward.1}
  #allocation0 [shape = 'u32[]', space=smem, size = 0x4, offset = 0x4, fixed_abs, tag = 'smem constant byte address 0x4 - core index']
  #allocation1 [shape = 'u32[144,128]{1,0:T(1,128)}', space=vmem, size = 0x12000, scoped, tag = 'internal scratch']
  %s0 = inlined_call_operand.vmem [shape: f32[8,128], index: 0, kind: input, shape index: {}]
  %s1 = inlined_call_operand.vmem [shape: f32[128,128], index: 1, kind: input, shape index: {}]
  %s2 = inlined_call_operand.vmem [shape: f32[1,128], index: 2, kind: input, shape index: {}]
  %s3 = inlined_call_operand.vmem [shape: f32[5,128,128], index: 3, kind: input, shape index: {}]
  %s4 = inlined_call_operand.vmem [shape: f32[5,1,128], index: 4, kind: input, shape index: {}]
  %s5 = inlined_call_operand.vmem [shape: f32[128,128], index: 5, kind: input, shape index: {}]
  %s6 = inlined_call_operand.vmem [shape: f32[1,128], index: 6, kind: input, shape index: {}]
  %s7 = inlined_call_operand.vmem [shape: f32[8,128], index: 7, kind: output, shape index: {}]
  %s8 = sld [smem:[#allocation0]]
  $region38: #{cann_forward.1} parent=0
    _
  %s10 = ssub.s32 1, %s8
  %s11 = scalar_select 0, %s10, %s8
  // Predicated region
  $region2: #{cann_forward.1} parent=0 // pred_check
    _
  $region3: #{cann_forward.1} parent=0 // pred_check_branch
    %13 = sbr.rel (0) target = $region5
  $region4: #{cann_forward.1} parent=0 // pred_region
    _
  $region5: #{cann_forward.1} parent=0 // pred_fallthru
    _
  // Predicated region
  $region6: #{cann_forward.1} parent=0 // pred_check
    _
  $region7: #{cann_forward.1} parent=0 // pred_check_branch
    %15 = sbr.rel (0) target = $region9
  $region8: #{cann_forward.1} parent=0 // pred_region
    _
  $region9: #{cann_forward.1} parent=0 // pred_fallthru
    _
  // Predicated region
  $region10: #{cann_forward.1} parent=0 // pred_check
    _
  $region11: #{cann_forward.1} parent=0 // pred_check_branch
    %17 = sbr.rel (0) target = $region13
  $region12: #{cann_forward.1} parent=0 // pred_region
    _
  $region13: #{cann_forward.1} parent=0 // pred_fallthru
    _
  // Predicated region
  $region14: #{cann_forward.1} parent=0 // pred_check
    _
  $region15: #{cann_forward.1} parent=0 // pred_check_branch
    %19 = sbr.rel (0) target = $region17
  $region16: #{cann_forward.1} parent=0 // pred_region
    _
  $region17: #{cann_forward.1} parent=0 // pred_fallthru
    _
  // Predicated region
  $region18: #{cann_forward.1} parent=0 // pred_check
    _
  $region19: #{cann_forward.1} parent=0 // pred_check_branch
    %21 = sbr.rel (0) target = $region21
  $region20: #{cann_forward.1} parent=0 // pred_region
    _
  $region21: #{cann_forward.1} parent=0 // pred_fallthru
    _
  // Predicated region
  $region22: #{cann_forward.1} parent=0 // pred_check
    _
  $region23: #{cann_forward.1} parent=0 // pred_check_branch
    %23 = sbr.rel (0) target = $region25
  $region24: #{cann_forward.1} parent=0 // pred_region
    _
  $region25: #{cann_forward.1} parent=0 // pred_fallthru
    _
  // Predicated region
  $region26: #{cann_forward.1} parent=0 // pred_check
    _
  $region27: #{cann_forward.1} parent=0 // pred_check_branch
    %25 = sbr.rel (0) target = $region29
  $region28: #{cann_forward.1} parent=0 // pred_region
    _
  $region29: #{cann_forward.1} parent=0 // pred_fallthru
    _
  %v26 = vld [vmem:[%s0] sm:$0xff]
  %v27 = vld [vmem:[%s1] sm:$0xff]
  %v28 = vld [vmem:[%s1 + $0x8] sm:$0xff]
  %v29 = vld [vmem:[%s1 + $0x10] sm:$0xff]
  %v30 = vld [vmem:[%s1 + $0x18] sm:$0xff]
  %v31 = vld [vmem:[%s1 + $0x20] sm:$0xff]
  %v32 = vld [vmem:[%s1 + $0x28] sm:$0xff]
  %v33 = vld [vmem:[%s1 + $0x30] sm:$0xff]
  %v34 = vld [vmem:[%s1 + $0x38] sm:$0xff]
  %v35 = vld [vmem:[%s1 + $0x40] sm:$0xff]
  %v36 = vld [vmem:[%s1 + $0x48] sm:$0xff]
  %v37 = vld [vmem:[%s1 + $0x50] sm:$0xff]
  %v38 = vld [vmem:[%s1 + $0x58] sm:$0xff]
  %v39 = vld [vmem:[%s1 + $0x60] sm:$0xff]
  %v40 = vld [vmem:[%s1 + $0x68] sm:$0xff]
  %v41 = vld [vmem:[%s1 + $0x70] sm:$0xff]
  %v42 = vld [vmem:[%s1 + $0x78] sm:$0xff]
  %v43 = vld [vmem:[%s2] sm:$0x1]
  %v45 = vlaneseq
  %v46 = vshrl.u32 %v45, 7
  %v47 = vsub.s32 0, %v46
  %v48 = vrot.slane %v43, %v47
  %50 = vmatprep.subr.mxu0 0.0
  %51 = vmatpush1.msra.mxu0 %v27
  %52 = vmatprep.subr.mxu0 0.0
  %53 = vmatpush1.msra.mxu0 %v28
  %54 = vmatprep.subr.mxu0 0.0
  %55 = vmatpush1.msra.mxu0 %v29
  %56 = vmatprep.subr.mxu0 0.0
  %57 = vmatpush1.msra.mxu0 %v30
  %58 = vmatprep.subr.mxu0 0.0
  %59 = vmatpush1.msra.mxu0 %v31
  %60 = vmatprep.subr.mxu0 0.0
  %61 = vmatpush1.msra.mxu0 %v32
  %62 = vmatprep.subr.mxu0 0.0
  %63 = vmatpush1.msra.mxu0 %v33
  %64 = vmatprep.subr.mxu0 0.0
  %65 = vmatpush1.msra.mxu0 %v34
  %66 = vmatprep.subr.mxu0 0.0
  %67 = vmatpush1.msra.mxu0 %v35
  %68 = vmatprep.subr.mxu0 0.0
  %69 = vmatpush1.msra.mxu0 %v36
  %70 = vmatprep.subr.mxu0 0.0
  %71 = vmatpush1.msra.mxu0 %v37
  %72 = vmatprep.subr.mxu0 0.0
  %73 = vmatpush1.msra.mxu0 %v38
  %74 = vmatprep.subr.mxu0 0.0
  %75 = vmatpush1.msra.mxu0 %v39
  %76 = vmatprep.subr.mxu0 0.0
  %77 = vmatpush1.msra.mxu0 %v40
  %78 = vmatprep.subr.mxu0 0.0
  %79 = vmatpush1.msra.mxu0 %v41
  %80 = vmatprep.subr.mxu0 0.0
  %81 = vmatpush1.msra.mxu0 %v42
  %82 = vmatprep.subr.mxu0 0.0
  %83 = vmatpush1.msra.mxu0 0.0
  %84 = vmatprep.subr.mxu0 0.0
  %85 = vmatpush1.msra.mxu0 0.0
  %86 = vmatprep.subr.mxu0 0.0
  %87 = vmatpush1.msra.mxu0 0.0
  %88 = vmatprep.subr.mxu0 0.0
  %89 = vmatpush1.msra.mxu0 0.0
  %90 = vmatprep.subr.mxu0 0.0
  %91 = vmatpush1.msra.mxu0 0.0
  %92 = vmatprep.subr.mxu0 0.0
  %93 = vmatpush1.msra.mxu0 0.0
  %94 = vmatprep.subr.mxu0 0.0
  %95 = vmatpush1.msra.mxu0 0.0
  %96 = vmatprep.subr.mxu0 0.0
  %97 = vmatpush1.msra.mxu0 0.0
  %98 = vmatprep.subr.mxu0 0.0
  %99 = vmatpush1.msra.mxu0 0.0
  %100 = vmatprep.subr.mxu0 0.0
  %101 = vmatpush1.msra.mxu0 0.0
  %102 = vmatprep.subr.mxu0 0.0
  %103 = vmatpush1.msra.mxu0 0.0
  %104 = vmatprep.subr.mxu0 0.0
  %105 = vmatpush1.msra.mxu0 0.0
  %106 = vmatprep.subr.mxu0 0.0
  %107 = vmatpush1.msra.mxu0 0.0
  %108 = vmatprep.subr.mxu0 0.0
  %109 = vmatpush1.msra.mxu0 0.0
  %110 = vmatprep.subr.mxu0 0.0
  %111 = vmatpush1.msra.mxu0 0.0
  %112 = vmatprep.subr.mxu0 0.0
  %113 = vmatpush1.msra.mxu0 0.0
  %114 = vmatprep.mubr.f32.mxu0 0.0
  %115 = vmatmul.mubr.f32.gmra.mrb[0].mxu0 %v26
  %v116 = vpop.f32.mrb[0].mxu0
  %v117 = vadd.f32 %v48, %v116
  %v118 = vpop.f32.mrb[0].mxu0
  %119 = vdwg.mxu0
  %v120 = vmax.f32 %v117, 0.0
  %v121 = vld [vmem:[%s3] sm:$0xff]
  %v122 = vld [vmem:[%s3 + $0x8] sm:$0xff]
  %v123 = vld [vmem:[%s3 + $0x10] sm:$0xff]
  %v124 = vld [vmem:[%s3 + $0x18] sm:$0xff]
  %v125 = vld [vmem:[%s3 + $0x20] sm:$0xff]
  %v126 = vld [vmem:[%s3 + $0x28] sm:$0xff]
  %v127 = vld [vmem:[%s3 + $0x30] sm:$0xff]
  %v128 = vld [vmem:[%s3 + $0x38] sm:$0xff]
  %v129 = vld [vmem:[%s3 + $0x40] sm:$0xff]
  %v130 = vld [vmem:[%s3 + $0x48] sm:$0xff]
  %v131 = vld [vmem:[%s3 + $0x50] sm:$0xff]
  %v132 = vld [vmem:[%s3 + $0x58] sm:$0xff]
  %v133 = vld [vmem:[%s3 + $0x60] sm:$0xff]
  %v134 = vld [vmem:[%s3 + $0x68] sm:$0xff]
  %v135 = vld [vmem:[%s3 + $0x70] sm:$0xff]
  %v136 = vld [vmem:[%s3 + $0x78] sm:$0xff]
  %v137 = vld [vmem:[%s4] sm:$0x1]
  %v139 = vlaneseq
  %v140 = vshrl.u32 %v139, 7
  %v141 = vsub.s32 0, %v140
  %v142 = vrot.slane %v137, %v141
  %144 = vmatprep.subr.mxu0 0.0
  %145 = vmatpush1.msra.mxu0 %v121
  %146 = vmatprep.subr.mxu0 0.0
  %147 = vmatpush1.msra.mxu0 %v122
  %148 = vmatprep.subr.mxu0 0.0
  %149 = vmatpush1.msra.mxu0 %v123
  %150 = vmatprep.subr.mxu0 0.0
  %151 = vmatpush1.msra.mxu0 %v124
  %152 = vmatprep.subr.mxu0 0.0
  %153 = vmatpush1.msra.mxu0 %v125
  %154 = vmatprep.subr.mxu0 0.0
  %155 = vmatpush1.msra.mxu0 %v126
  %156 = vmatprep.subr.mxu0 0.0
  %157 = vmatpush1.msra.mxu0 %v127
  %158 = vmatprep.subr.mxu0 0.0
  %159 = vmatpush1.msra.mxu0 %v128
  %160 = vmatprep.subr.mxu0 0.0
  %161 = vmatpush1.msra.mxu0 %v129
  %162 = vmatprep.subr.mxu0 0.0
  %163 = vmatpush1.msra.mxu0 %v130
  %164 = vmatprep.subr.mxu0 0.0
  %165 = vmatpush1.msra.mxu0 %v131
  %166 = vmatprep.subr.mxu0 0.0
  %167 = vmatpush1.msra.mxu0 %v132
  %168 = vmatprep.subr.mxu0 0.0
  %169 = vmatpush1.msra.mxu0 %v133
  %170 = vmatprep.subr.mxu0 0.0
  %171 = vmatpush1.msra.mxu0 %v134
  %172 = vmatprep.subr.mxu0 0.0
  %173 = vmatpush1.msra.mxu0 %v135
  %174 = vmatprep.subr.mxu0 0.0
  %175 = vmatpush1.msra.mxu0 %v136
  %176 = vmatprep.subr.mxu0 0.0
  %177 = vmatpush1.msra.mxu0 0.0
  %178 = vmatprep.subr.mxu0 0.0
  %179 = vmatpush1.msra.mxu0 0.0
  %180 = vmatprep.subr.mxu0 0.0
  %181 = vmatpush1.msra.mxu0 0.0
  %182 = vmatprep.subr.mxu0 0.0
  %183 = vmatpush1.msra.mxu0 0.0
  %184 = vmatprep.subr.mxu0 0.0
  %185 = vmatpush1.msra.mxu0 0.0
  %186 = vmatprep.subr.mxu0 0.0
  %187 = vmatpush1.msra.mxu0 0.0
  %188 = vmatprep.subr.mxu0 0.0
  %189 = vmatpush1.msra.mxu0 0.0
  %190 = vmatprep.subr.mxu0 0.0
  %191 = vmatpush1.msra.mxu0 0.0
  %192 = vmatprep.subr.mxu0 0.0
  %193 = vmatpush1.msra.mxu0 0.0
  %194 = vmatprep.subr.mxu0 0.0
  %195 = vmatpush1.msra.mxu0 0.0
  %196 = vmatprep.subr.mxu0 0.0
  %197 = vmatpush1.msra.mxu0 0.0
  %198 = vmatprep.subr.mxu0 0.0
  %199 = vmatpush1.msra.mxu0 0.0
  %200 = vmatprep.subr.mxu0 0.0
  %201 = vmatpush1.msra.mxu0 0.0
  %202 = vmatprep.subr.mxu0 0.0
  %203 = vmatpush1.msra.mxu0 0.0
  %204 = vmatprep.subr.mxu0 0.0
  %205 = vmatpush1.msra.mxu0 0.0
  %206 = vmatprep.subr.mxu0 0.0
  %207 = vmatpush1.msra.mxu0 0.0
  %208 = vmatprep.mubr.f32.mxu0 0.0
  %209 = vmatmul.mubr.f32.gmra.mrb[0].mxu0 %v120
  %v210 = vpop.f32.mrb[0].mxu0
  %v211 = vadd.f32 %v142, %v210
  %v212 = vpop.f32.mrb[0].mxu0
  %213 = vdwg.mxu0
  %v214 = vmax.f32 %v211, 0.0
  %s215 = scalar_lea.vmem %s3, 128
  %v216 = vld [vmem:[%s215] sm:$0xff]
  %v217 = vld [vmem:[%s215 + $0x8] sm:$0xff]
  %v218 = vld [vmem:[%s215 + $0x10] sm:$0xff]
  %v219 = vld [vmem:[%s215 + $0x18] sm:$0xff]
  %v220 = vld [vmem:[%s215 + $0x20] sm:$0xff]
  %v221 = vld [vmem:[%s215 + $0x28] sm:$0xff]
  %v222 = vld [vmem:[%s215 + $0x30] sm:$0xff]
  %v223 = vld [vmem:[%s215 + $0x38] sm:$0xff]
  %v224 = vld [vmem:[%s215 + $0x40] sm:$0xff]
  %v225 = vld [vmem:[%s215 + $0x48] sm:$0xff]
  %v226 = vld [vmem:[%s215 + $0x50] sm:$0xff]
  %v227 = vld [vmem:[%s215 + $0x58] sm:$0xff]
  %v228 = vld [vmem:[%s215 + $0x60] sm:$0xff]
  %v229 = vld [vmem:[%s215 + $0x68] sm:$0xff]
  %v230 = vld [vmem:[%s215 + $0x70] sm:$0xff]
  %v231 = vld [vmem:[%s215 + $0x78] sm:$0xff]
  %s232 = scalar_lea.vmem %s4, 1
  %v233 = vld [vmem:[%s232] sm:$0x1]
  %v235 = vlaneseq
  %v236 = vshrl.u32 %v235, 7
  %v237 = vsub.s32 0, %v236
  %v238 = vrot.slane %v233, %v237
  %240 = vmatprep.subr.mxu0 0.0
  %241 = vmatpush1.msra.mxu0 %v216
  %242 = vmatprep.subr.mxu0 0.0
  %243 = vmatpush1.msra.mxu0 %v217
  %244 = vmatprep.subr.mxu0 0.0
  %245 = vmatpush1.msra.mxu0 %v218
  %246 = vmatprep.subr.mxu0 0.0
  %247 = vmatpush1.msra.mxu0 %v219
  %248 = vmatprep.subr.mxu0 0.0
  %249 = vmatpush1.msra.mxu0 %v220
  %250 = vmatprep.subr.mxu0 0.0
  %251 = vmatpush1.msra.mxu0 %v221
  %252 = vmatprep.subr.mxu0 0.0
  %253 = vmatpush1.msra.mxu0 %v222
  %254 = vmatprep.subr.mxu0 0.0
  %255 = vmatpush1.msra.mxu0 %v223
  %256 = vmatprep.subr.mxu0 0.0
  %257 = vmatpush1.msra.mxu0 %v224
  %258 = vmatprep.subr.mxu0 0.0
  %259 = vmatpush1.msra.mxu0 %v225
  %260 = vmatprep.subr.mxu0 0.0
  %261 = vmatpush1.msra.mxu0 %v226
  %262 = vmatprep.subr.mxu0 0.0
  %263 = vmatpush1.msra.mxu0 %v227
  %264 = vmatprep.subr.mxu0 0.0
  %265 = vmatpush1.msra.mxu0 %v228
  %266 = vmatprep.subr.mxu0 0.0
  %267 = vmatpush1.msra.mxu0 %v229
  %268 = vmatprep.subr.mxu0 0.0
  %269 = vmatpush1.msra.mxu0 %v230
  %270 = vmatprep.subr.mxu0 0.0
  %271 = vmatpush1.msra.mxu0 %v231
  %272 = vmatprep.subr.mxu0 0.0
  %273 = vmatpush1.msra.mxu0 0.0
  %274 = vmatprep.subr.mxu0 0.0
  %275 = vmatpush1.msra.mxu0 0.0
  %276 = vmatprep.subr.mxu0 0.0
  %277 = vmatpush1.msra.mxu0 0.0
  %278 = vmatprep.subr.mxu0 0.0
  %279 = vmatpush1.msra.mxu0 0.0
  %280 = vmatprep.subr.mxu0 0.0
  %281 = vmatpush1.msra.mxu0 0.0
  %282 = vmatprep.subr.mxu0 0.0
  %283 = vmatpush1.msra.mxu0 0.0
  %284 = vmatprep.subr.mxu0 0.0
  %285 = vmatpush1.msra.mxu0 0.0
  %286 = vmatprep.subr.mxu0 0.0
  %287 = vmatpush1.msra.mxu0 0.0
  %288 = vmatprep.subr.mxu0 0.0
  %289 = vmatpush1.msra.mxu0 0.0
  %290 = vmatprep.subr.mxu0 0.0
  %291 = vmatpush1.msra.mxu0 0.0
  %292 = vmatprep.subr.mxu0 0.0
  %293 = vmatpush1.msra.mxu0 0.0
  %294 = vmatprep.subr.mxu0 0.0
  %295 = vmatpush1.msra.mxu0 0.0
  %296 = vmatprep.subr.mxu0 0.0
  %297 = vmatpush1.msra.mxu0 0.0
  %298 = vmatprep.subr.mxu0 0.0
  %299 = vmatpush1.msra.mxu0 0.0
  %300 = vmatprep.subr.mxu0 0.0
  %301 = vmatpush1.msra.mxu0 0.0
  %302 = vmatprep.subr.mxu0 0.0
  %303 = vmatpush1.msra.mxu0 0.0
  %304 = vmatprep.mubr.f32.mxu0 0.0
  %305 = vmatmul.mubr.f32.gmra.mrb[0].mxu0 %v214
  %v306 = vpop.f32.mrb[0].mxu0
  %v307 = vadd.f32 %v238, %v306
  %v308 = vpop.f32.mrb[0].mxu0
  %309 = vdwg.mxu0
  %v310 = vmax.f32 %v307, 0.0
  %s311 = scalar_lea.vmem %s3, 256
  %v312 = vld [vmem:[%s311] sm:$0xff]
  %v313 = vld [vmem:[%s311 + $0x8] sm:$0xff]
  %v314 = vld [vmem:[%s311 + $0x10] sm:$0xff]
  %v315 = vld [vmem:[%s311 + $0x18] sm:$0xff]
  %v316 = vld [vmem:[%s311 + $0x20] sm:$0xff]
  %v317 = vld [vmem:[%s311 + $0x28] sm:$0xff]
  %v318 = vld [vmem:[%s311 + $0x30] sm:$0xff]
  %v319 = vld [vmem:[%s311 + $0x38] sm:$0xff]
  %v320 = vld [vmem:[%s311 + $0x40] sm:$0xff]
  %v321 = vld [vmem:[%s311 + $0x48] sm:$0xff]
  %v322 = vld [vmem:[%s311 + $0x50] sm:$0xff]
  %v323 = vld [vmem:[%s311 + $0x58] sm:$0xff]
  %v324 = vld [vmem:[%s311 + $0x60] sm:$0xff]
  %v325 = vld [vmem:[%s311 + $0x68] sm:$0xff]
  %v326 = vld [vmem:[%s311 + $0x70] sm:$0xff]
  %v327 = vld [vmem:[%s311 + $0x78] sm:$0xff]
  %s328 = scalar_lea.vmem %s4, 2
  %v329 = vld [vmem:[%s328] sm:$0x1]
  %v331 = vlaneseq
  %v332 = vshrl.u32 %v331, 7
  %v333 = vsub.s32 0, %v332
  %v334 = vrot.slane %v329, %v333
  %336 = vmatprep.subr.mxu0 0.0
  %337 = vmatpush1.msra.mxu0 %v312
  %338 = vmatprep.subr.mxu0 0.0
  %339 = vmatpush1.msra.mxu0 %v313
  %340 = vmatprep.subr.mxu0 0.0
  %341 = vmatpush1.msra.mxu0 %v314
  %342 = vmatprep.subr.mxu0 0.0
  %343 = vmatpush1.msra.mxu0 %v315
  %344 = vmatprep.subr.mxu0 0.0
  %345 = vmatpush1.msra.mxu0 %v316
  %346 = vmatprep.subr.mxu0 0.0
  %347 = vmatpush1.msra.mxu0 %v317
  %348 = vmatprep.subr.mxu0 0.0
  %349 = vmatpush1.msra.mxu0 %v318
  %350 = vmatprep.subr.mxu0 0.0
  %351 = vmatpush1.msra.mxu0 %v319
  %352 = vmatprep.subr.mxu0 0.0
  %353 = vmatpush1.msra.mxu0 %v320
  %354 = vmatprep.subr.mxu0 0.0
  %355 = vmatpush1.msra.mxu0 %v321
  %356 = vmatprep.subr.mxu0 0.0
  %357 = vmatpush1.msra.mxu0 %v322
  %358 = vmatprep.subr.mxu0 0.0
  %359 = vmatpush1.msra.mxu0 %v323
  %360 = vmatprep.subr.mxu0 0.0
  %361 = vmatpush1.msra.mxu0 %v324
  %362 = vmatprep.subr.mxu0 0.0
  %363 = vmatpush1.msra.mxu0 %v325
  %364 = vmatprep.subr.mxu0 0.0
  %365 = vmatpush1.msra.mxu0 %v326
  %366 = vmatprep.subr.mxu0 0.0
  %367 = vmatpush1.msra.mxu0 %v327
  %368 = vmatprep.subr.mxu0 0.0
  %369 = vmatpush1.msra.mxu0 0.0
  %370 = vmatprep.subr.mxu0 0.0
  %371 = vmatpush1.msra.mxu0 0.0
  %372 = vmatprep.subr.mxu0 0.0
  %373 = vmatpush1.msra.mxu0 0.0
  %374 = vmatprep.subr.mxu0 0.0
  %375 = vmatpush1.msra.mxu0 0.0
  %376 = vmatprep.subr.mxu0 0.0
  %377 = vmatpush1.msra.mxu0 0.0
  %378 = vmatprep.subr.mxu0 0.0
  %379 = vmatpush1.msra.mxu0 0.0
  %380 = vmatprep.subr.mxu0 0.0
  %381 = vmatpush1.msra.mxu0 0.0
  %382 = vmatprep.subr.mxu0 0.0
  %383 = vmatpush1.msra.mxu0 0.0
  %384 = vmatprep.subr.mxu0 0.0
  %385 = vmatpush1.msra.mxu0 0.0
  %386 = vmatprep.subr.mxu0 0.0
  %387 = vmatpush1.msra.mxu0 0.0
  %388 = vmatprep.subr.mxu0 0.0
  %389 = vmatpush1.msra.mxu0 0.0
  %390 = vmatprep.subr.mxu0 0.0
  %391 = vmatpush1.msra.mxu0 0.0
  %392 = vmatprep.subr.mxu0 0.0
  %393 = vmatpush1.msra.mxu0 0.0
  %394 = vmatprep.subr.mxu0 0.0
  %395 = vmatpush1.msra.mxu0 0.0
  %396 = vmatprep.subr.mxu0 0.0
  %397 = vmatpush1.msra.mxu0 0.0
  %398 = vmatprep.subr.mxu0 0.0
  %399 = vmatpush1.msra.mxu0 0.0
  %400 = vmatprep.mubr.f32.mxu0 0.0
  %401 = vmatmul.mubr.f32.gmra.mrb[0].mxu0 %v310
  %v402 = vpop.f32.mrb[0].mxu0
  %v403 = vadd.f32 %v334, %v402
  %v404 = vpop.f32.mrb[0].mxu0
  %405 = vdwg.mxu0
  %v406 = vmax.f32 %v403, 0.0
  %s407 = scalar_lea.vmem %s3, 384
  %v408 = vld [vmem:[%s407] sm:$0xff]
  %v409 = vld [vmem:[%s407 + $0x8] sm:$0xff]
  %v410 = vld [vmem:[%s407 + $0x10] sm:$0xff]
  %v411 = vld [vmem:[%s407 + $0x18] sm:$0xff]
  %v412 = vld [vmem:[%s407 + $0x20] sm:$0xff]
  %v413 = vld [vmem:[%s407 + $0x28] sm:$0xff]
  %v414 = vld [vmem:[%s407 + $0x30] sm:$0xff]
  %v415 = vld [vmem:[%s407 + $0x38] sm:$0xff]
  %v416 = vld [vmem:[%s407 + $0x40] sm:$0xff]
  %v417 = vld [vmem:[%s407 + $0x48] sm:$0xff]
  %v418 = vld [vmem:[%s407 + $0x50] sm:$0xff]
  %v419 = vld [vmem:[%s407 + $0x58] sm:$0xff]
  %v420 = vld [vmem:[%s407 + $0x60] sm:$0xff]
  %v421 = vld [vmem:[%s407 + $0x68] sm:$0xff]
  %v422 = vld [vmem:[%s407 + $0x70] sm:$0xff]
  %v423 = vld [vmem:[%s407 + $0x78] sm:$0xff]
  %s424 = scalar_lea.vmem %s4, 3
  %v425 = vld [vmem:[%s424] sm:$0x1]
  %v427 = vlaneseq
  %v428 = vshrl.u32 %v427, 7
  %v429 = vsub.s32 0, %v428
  %v430 = vrot.slane %v425, %v429
  %432 = vmatprep.subr.mxu0 0.0
  %433 = vmatpush1.msra.mxu0 %v408
  %434 = vmatprep.subr.mxu0 0.0
  %435 = vmatpush1.msra.mxu0 %v409
  %436 = vmatprep.subr.mxu0 0.0
  %437 = vmatpush1.msra.mxu0 %v410
  %438 = vmatprep.subr.mxu0 0.0
  %439 = vmatpush1.msra.mxu0 %v411
  %440 = vmatprep.subr.mxu0 0.0
  %441 = vmatpush1.msra.mxu0 %v412
  %442 = vmatprep.subr.mxu0 0.0
  %443 = vmatpush1.msra.mxu0 %v413
  %444 = vmatprep.subr.mxu0 0.0
  %445 = vmatpush1.msra.mxu0 %v414
  %446 = vmatprep.subr.mxu0 0.0
  %447 = vmatpush1.msra.mxu0 %v415
  %448 = vmatprep.subr.mxu0 0.0
  %449 = vmatpush1.msra.mxu0 %v416
  %450 = vmatprep.subr.mxu0 0.0
  %451 = vmatpush1.msra.mxu0 %v417
  %452 = vmatprep.subr.mxu0 0.0
  %453 = vmatpush1.msra.mxu0 %v418
  %454 = vmatprep.subr.mxu0 0.0
  %455 = vmatpush1.msra.mxu0 %v419
  %456 = vmatprep.subr.mxu0 0.0
  %457 = vmatpush1.msra.mxu0 %v420
  %458 = vmatprep.subr.mxu0 0.0
  %459 = vmatpush1.msra.mxu0 %v421
  %460 = vmatprep.subr.mxu0 0.0
  %461 = vmatpush1.msra.mxu0 %v422
  %462 = vmatprep.subr.mxu0 0.0
  %463 = vmatpush1.msra.mxu0 %v423
  %464 = vmatprep.subr.mxu0 0.0
  %465 = vmatpush1.msra.mxu0 0.0
  %466 = vmatprep.subr.mxu0 0.0
  %467 = vmatpush1.msra.mxu0 0.0
  %468 = vmatprep.subr.mxu0 0.0
  %469 = vmatpush1.msra.mxu0 0.0
  %470 = vmatprep.subr.mxu0 0.0
  %471 = vmatpush1.msra.mxu0 0.0
  %472 = vmatprep.subr.mxu0 0.0
  %473 = vmatpush1.msra.mxu0 0.0
  %474 = vmatprep.subr.mxu0 0.0
  %475 = vmatpush1.msra.mxu0 0.0
  %476 = vmatprep.subr.mxu0 0.0
  %477 = vmatpush1.msra.mxu0 0.0
  %478 = vmatprep.subr.mxu0 0.0
  %479 = vmatpush1.msra.mxu0 0.0
  %480 = vmatprep.subr.mxu0 0.0
  %481 = vmatpush1.msra.mxu0 0.0
  %482 = vmatprep.subr.mxu0 0.0
  %483 = vmatpush1.msra.mxu0 0.0
  %484 = vmatprep.subr.mxu0 0.0
  %485 = vmatpush1.msra.mxu0 0.0
  %486 = vmatprep.subr.mxu0 0.0
  %487 = vmatpush1.msra.mxu0 0.0
  %488 = vmatprep.subr.mxu0 0.0
  %489 = vmatpush1.msra.mxu0 0.0
  %490 = vmatprep.subr.mxu0 0.0
  %491 = vmatpush1.msra.mxu0 0.0
  %492 = vmatprep.subr.mxu0 0.0
  %493 = vmatpush1.msra.mxu0 0.0
  %494 = vmatprep.subr.mxu0 0.0
  %495 = vmatpush1.msra.mxu0 0.0
  %496 = vmatprep.mubr.f32.mxu0 0.0
  %497 = vmatmul.mubr.f32.gmra.mrb[0].mxu0 %v406
  %v498 = vpop.f32.mrb[0].mxu0
  %v499 = vadd.f32 %v430, %v498
  %v500 = vpop.f32.mrb[0].mxu0
  %501 = vdwg.mxu0
  %v502 = vmax.f32 %v499, 0.0
  %s503 = scalar_lea.vmem %s3, 512
  %v504 = vld [vmem:[%s503] sm:$0xff]
  %v505 = vld [vmem:[%s503 + $0x8] sm:$0xff]
  %v506 = vld [vmem:[%s503 + $0x10] sm:$0xff]
  %v507 = vld [vmem:[%s503 + $0x18] sm:$0xff]
  %v508 = vld [vmem:[%s503 + $0x20] sm:$0xff]
  %v509 = vld [vmem:[%s503 + $0x28] sm:$0xff]
  %v510 = vld [vmem:[%s503 + $0x30] sm:$0xff]
  %v511 = vld [vmem:[%s503 + $0x38] sm:$0xff]
  %v512 = vld [vmem:[%s503 + $0x40] sm:$0xff]
  %v513 = vld [vmem:[%s503 + $0x48] sm:$0xff]
  %v514 = vld [vmem:[%s503 + $0x50] sm:$0xff]
  %v515 = vld [vmem:[%s503 + $0x58] sm:$0xff]
  %v516 = vld [vmem:[%s503 + $0x60] sm:$0xff]
  %v517 = vld [vmem:[%s503 + $0x68] sm:$0xff]
  %v518 = vld [vmem:[%s503 + $0x70] sm:$0xff]
  %v519 = vld [vmem:[%s503 + $0x78] sm:$0xff]
  %s520 = scalar_lea.vmem %s4, 4
  %v521 = vld [vmem:[%s520] sm:$0x1]
  %v523 = vlaneseq
  %v524 = vshrl.u32 %v523, 7
  %v525 = vsub.s32 0, %v524
  %v526 = vrot.slane %v521, %v525
  %528 = vmatprep.subr.mxu0 0.0
  %529 = vmatpush1.msra.mxu0 %v504
  %530 = vmatprep.subr.mxu0 0.0
  %531 = vmatpush1.msra.mxu0 %v505
  %532 = vmatprep.subr.mxu0 0.0
  %533 = vmatpush1.msra.mxu0 %v506
  %534 = vmatprep.subr.mxu0 0.0
  %535 = vmatpush1.msra.mxu0 %v507
  %536 = vmatprep.subr.mxu0 0.0
  %537 = vmatpush1.msra.mxu0 %v508
  %538 = vmatprep.subr.mxu0 0.0
  %539 = vmatpush1.msra.mxu0 %v509
  %540 = vmatprep.subr.mxu0 0.0
  %541 = vmatpush1.msra.mxu0 %v510
  %542 = vmatprep.subr.mxu0 0.0
  %543 = vmatpush1.msra.mxu0 %v511
  %544 = vmatprep.subr.mxu0 0.0
  %545 = vmatpush1.msra.mxu0 %v512
  %546 = vmatprep.subr.mxu0 0.0
  %547 = vmatpush1.msra.mxu0 %v513
  %548 = vmatprep.subr.mxu0 0.0
  %549 = vmatpush1.msra.mxu0 %v514
  %550 = vmatprep.subr.mxu0 0.0
  %551 = vmatpush1.msra.mxu0 %v515
  %552 = vmatprep.subr.mxu0 0.0
  %553 = vmatpush1.msra.mxu0 %v516
  %554 = vmatprep.subr.mxu0 0.0
  %555 = vmatpush1.msra.mxu0 %v517
  %556 = vmatprep.subr.mxu0 0.0
  %557 = vmatpush1.msra.mxu0 %v518
  %558 = vmatprep.subr.mxu0 0.0
  %559 = vmatpush1.msra.mxu0 %v519
  %560 = vmatprep.subr.mxu0 0.0
  %561 = vmatpush1.msra.mxu0 0.0
  %562 = vmatprep.subr.mxu0 0.0
  %563 = vmatpush1.msra.mxu0 0.0
  %564 = vmatprep.subr.mxu0 0.0
  %565 = vmatpush1.msra.mxu0 0.0
  %566 = vmatprep.subr.mxu0 0.0
  %567 = vmatpush1.msra.mxu0 0.0
  %568 = vmatprep.subr.mxu0 0.0
  %569 = vmatpush1.msra.mxu0 0.0
  %570 = vmatprep.subr.mxu0 0.0
  %571 = vmatpush1.msra.mxu0 0.0
  %572 = vmatprep.subr.mxu0 0.0
  %573 = vmatpush1.msra.mxu0 0.0
  %574 = vmatprep.subr.mxu0 0.0
  %575 = vmatpush1.msra.mxu0 0.0
  %576 = vmatprep.subr.mxu0 0.0
  %577 = vmatpush1.msra.mxu0 0.0
  %578 = vmatprep.subr.mxu0 0.0
  %579 = vmatpush1.msra.mxu0 0.0
  %580 = vmatprep.subr.mxu0 0.0
  %581 = vmatpush1.msra.mxu0 0.0
  %582 = vmatprep.subr.mxu0 0.0
  %583 = vmatpush1.msra.mxu0 0.0
  %584 = vmatprep.subr.mxu0 0.0
  %585 = vmatpush1.msra.mxu0 0.0
  %586 = vmatprep.subr.mxu0 0.0
  %587 = vmatpush1.msra.mxu0 0.0
  %588 = vmatprep.subr.mxu0 0.0
  %589 = vmatpush1.msra.mxu0 0.0
  %590 = vmatprep.subr.mxu0 0.0
  %591 = vmatpush1.msra.mxu0 0.0
  %592 = vmatprep.mubr.f32.mxu0 0.0
  %593 = vmatmul.mubr.f32.gmra.mrb[0].mxu0 %v502
  %v594 = vpop.f32.mrb[0].mxu0
  %v595 = vadd.f32 %v526, %v594
  %v596 = vpop.f32.mrb[0].mxu0
  %597 = vdwg.mxu0
  %v598 = vmax.f32 %v595, 0.0
  %v599 = vld [vmem:[%s5] sm:$0xff]
  %v600 = vld [vmem:[%s5 + $0x8] sm:$0xff]
  %v601 = vld [vmem:[%s5 + $0x10] sm:$0xff]
  %v602 = vld [vmem:[%s5 + $0x18] sm:$0xff]
  %v603 = vld [vmem:[%s5 + $0x20] sm:$0xff]
  %v604 = vld [vmem:[%s5 + $0x28] sm:$0xff]
  %v605 = vld [vmem:[%s5 + $0x30] sm:$0xff]
  %v606 = vld [vmem:[%s5 + $0x38] sm:$0xff]
  %v607 = vld [vmem:[%s5 + $0x40] sm:$0xff]
  %v608 = vld [vmem:[%s5 + $0x48] sm:$0xff]
  %v609 = vld [vmem:[%s5 + $0x50] sm:$0xff]
  %v610 = vld [vmem:[%s5 + $0x58] sm:$0xff]
  %v611 = vld [vmem:[%s5 + $0x60] sm:$0xff]
  %v612 = vld [vmem:[%s5 + $0x68] sm:$0xff]
  %v613 = vld [vmem:[%s5 + $0x70] sm:$0xff]
  %v614 = vld [vmem:[%s5 + $0x78] sm:$0xff]
  %v615 = vld [vmem:[%s6] sm:$0x1]
  %v617 = vlaneseq
  %v618 = vshrl.u32 %v617, 7
  %v619 = vsub.s32 0, %v618
  %v620 = vrot.slane %v615, %v619
  %622 = vmatprep.subr.mxu0 0.0
  %623 = vmatpush1.msra.mxu0 %v599
  %624 = vmatprep.subr.mxu0 0.0
  %625 = vmatpush1.msra.mxu0 %v600
  %626 = vmatprep.subr.mxu0 0.0
  %627 = vmatpush1.msra.mxu0 %v601
  %628 = vmatprep.subr.mxu0 0.0
  %629 = vmatpush1.msra.mxu0 %v602
  %630 = vmatprep.subr.mxu0 0.0
  %631 = vmatpush1.msra.mxu0 %v603
  %632 = vmatprep.subr.mxu0 0.0
  %633 = vmatpush1.msra.mxu0 %v604
  %634 = vmatprep.subr.mxu0 0.0
  %635 = vmatpush1.msra.mxu0 %v605
  %636 = vmatprep.subr.mxu0 0.0
  %637 = vmatpush1.msra.mxu0 %v606
  %638 = vmatprep.subr.mxu0 0.0
  %639 = vmatpush1.msra.mxu0 %v607
  %640 = vmatprep.subr.mxu0 0.0
  %641 = vmatpush1.msra.mxu0 %v608
  %642 = vmatprep.subr.mxu0 0.0
  %643 = vmatpush1.msra.mxu0 %v609
  %644 = vmatprep.subr.mxu0 0.0
  %645 = vmatpush1.msra.mxu0 %v610
  %646 = vmatprep.subr.mxu0 0.0
  %647 = vmatpush1.msra.mxu0 %v611
  %648 = vmatprep.subr.mxu0 0.0
  %649 = vmatpush1.msra.mxu0 %v612
  %650 = vmatprep.subr.mxu0 0.0
  %651 = vmatpush1.msra.mxu0 %v613
  %652 = vmatprep.subr.mxu0 0.0
  %653 = vmatpush1.msra.mxu0 %v614
  %654 = vmatprep.subr.mxu0 0.0
  %655 = vmatpush1.msra.mxu0 0.0
  %656 = vmatprep.subr.mxu0 0.0
  %657 = vmatpush1.msra.mxu0 0.0
  %658 = vmatprep.subr.mxu0 0.0
  %659 = vmatpush1.msra.mxu0 0.0
  %660 = vmatprep.subr.mxu0 0.0
  %661 = vmatpush1.msra.mxu0 0.0
  %662 = vmatprep.subr.mxu0 0.0
  %663 = vmatpush1.msra.mxu0 0.0
  %664 = vmatprep.subr.mxu0 0.0
  %665 = vmatpush1.msra.mxu0 0.0
  %666 = vmatprep.subr.mxu0 0.0
  %667 = vmatpush1.msra.mxu0 0.0
  %668 = vmatprep.subr.mxu0 0.0
  %669 = vmatpush1.msra.mxu0 0.0
  %670 = vmatprep.subr.mxu0 0.0
  %671 = vmatpush1.msra.mxu0 0.0
  %672 = vmatprep.subr.mxu0 0.0
  %673 = vmatpush1.msra.mxu0 0.0
  %674 = vmatprep.subr.mxu0 0.0
  %675 = vmatpush1.msra.mxu0 0.0
  %676 = vmatprep.subr.mxu0 0.0
  %677 = vmatpush1.msra.mxu0 0.0
  %678 = vmatprep.subr.mxu0 0.0
  %679 = vmatpush1.msra.mxu0 0.0
  %680 = vmatprep.subr.mxu0 0.0
  %681 = vmatpush1.msra.mxu0 0.0
  %682 = vmatprep.subr.mxu0 0.0
  %683 = vmatpush1.msra.mxu0 0.0
  %684 = vmatprep.subr.mxu0 0.0
  %685 = vmatpush1.msra.mxu0 0.0
  %686 = vmatprep.mubr.f32.mxu0 0.0
  %687 = vmatmul.mubr.f32.gmra.mrb[0].mxu0 %v598
  %v688 = vpop.f32.mrb[0].mxu0
  %v689 = vadd.f32 %v620, %v688
  %v690 = vpop.f32.mrb[0].mxu0
  %691 = vdwg.mxu0
  %692 = vst [vmem:[%s7] sm:$0xff] %v689
  // Predicated region
  $region30: #{cann_forward.1} parent=0 // pred_check
    _
  $region31: #{cann_forward.1} parent=0 // pred_check_branch
    %694 = sbr.rel (0) target = $region33
  $region32: #{cann_forward.1} parent=0 // pred_region
    _
  $region33: #{cann_forward.1} parent=0 // pred_fallthru
    _
  // Predicated region
  $region34: #{cann_forward.1} parent=0 // pred_check
    _
  $region35: #{cann_forward.1} parent=0 // pred_check_branch
    %696 = sbr.rel (0) target = $region37
  $region36: #{cann_forward.1} parent=0 // pred_region
    _
  $region37: #{cann_forward.1} parent=0 // pred_fallthru
    _

</llo_original>
